<compile_context>
chip_gen: v6e
topology: v6e:2x2x1
jax: 0.10.0
libtpu: 0.0.40
codegen_flags: <defaults>
</compile_context>

<pallas_src>
import functools

import jax
import jax.numpy as jnp
from jax.experimental import pallas as pl
from jax.experimental.pallas import tpu as pltpu


_H1, _H2, _H3 = 256, 128, 64
_LANE = 128
_SUBLANE = 8


def _round_up(x, m):
    return (x + m - 1) // m * m


def _pad2d(a, rows, cols):
    r, c = a.shape
    if r == rows and c == cols:
        return a
    return jnp.pad(a, ((0, rows - r), (0, cols - c)))


def _actor_kernel(action_domain,
                  s_ref, w1_ref, b1_ref, w2_ref, b2_ref,
                  w3_ref, b3_ref, w4_ref, b4_ref, out_ref):
    # MXU operands in the (pre-cast) weight dtype; accumulate + elementwise
    # (bias add, ReLU, tanh, scale) in f32 (v5e has no bf16 VPU/EUP).
    compute_dtype = w1_ref.dtype
    x = s_ref[...].astype(compute_dtype)

    h1 = jnp.dot(x, w1_ref[...], preferred_element_type=jnp.float32) + b1_ref[...]
    h1 = jnp.maximum(h1, 0.0).astype(compute_dtype)          # relu

    h2 = jnp.dot(h1, w2_ref[...], preferred_element_type=jnp.float32) + b2_ref[...]
    h2 = jnp.maximum(h2, 0.0).astype(compute_dtype)          # relu

    h3 = jnp.dot(h2, w3_ref[...], preferred_element_type=jnp.float32) + b3_ref[...]
    h3 = jnp.maximum(h3, 0.0).astype(compute_dtype)          # relu

    a = jnp.dot(h3, w4_ref[...], preferred_element_type=jnp.float32) + b4_ref[...]
    a = jnp.tanh(a) * action_domain                          # tanh, scale

    out_ref[...] = a.astype(out_ref.dtype)


def prepare_actor_params(params, compute_dtype=jnp.bfloat16):
    """One-time weight preparation (hoisted out of the per-call hot path).

    * w3/b3 output and w4 input (the contraction side of layer 4) are
      zero-padded 64 -> 128 so every MXU operand is lane-aligned; the padded
      h3 columns are exactly zero and multiply zero w4 rows, so the math is
      unchanged.  The OUTPUT side of w4 stays at action_dim (no lane pad).
    * Weights are cast to the MXU compute dtype once (halves weight HBM/VMEM
      traffic on the bf16 path); biases stay f32 (added to the f32 acc).
    """
    h3p = _round_up(_H3, _LANE)   # 64 -> 128
    return {
        "w1": params["w1"].astype(compute_dtype),
        "b1": params["b1"].astype(jnp.float32),
        "w2": params["w2"].astype(compute_dtype),
        "b2": params["b2"].astype(jnp.float32),
        "w3": _pad2d(params["w3"], _H2, h3p).astype(compute_dtype),
        "b3": _pad2d(params["b3"], 1, h3p).astype(jnp.float32),
        "w4": _pad2d(params["w4"], h3p, params["w4"].shape[1]).astype(compute_dtype),
        "b4": params["b4"].astype(jnp.float32),
    }


def _choose_tiling(batch, tm):
    """Pick (#tiles, tile rows, padded batch) with tiny pad and >=2 grid steps
    for B >= 16 so both v7x TensorCores get work."""
    bp8 = _round_up(max(batch, 1), _SUBLANE)
    n = pl.cdiv(bp8, tm)
    if bp8 >= 2 * _SUBLANE:
        n = max(n, 2)
    tm_eff = _round_up(pl.cdiv(bp8, n), _SUBLANE)
    bp = n * tm_eff                      # pads < 8*n rows beyond B
    return n, tm_eff, bp


def actor_forward(state, prepared, action_domain, *, tm=2048,
                  out_dtype=jnp.float32,
                  vmem_limit_bytes=32 * 1024 * 1024):
    """state: (B, state_dim) float32.  prepared: dict from prepare_actor_params.
    Returns (B, action_dim) actions in out_dtype."""
    w1, b1 = prepared["w1"], prepared["b1"]
    w2, b2 = prepared["w2"], prepared["b2"]
    w3, b3 = prepared["w3"], prepared["b3"]
    w4, b4 = prepared["w4"], prepared["b4"]

    B, state_dim = state.shape
    h3p = w4.shape[0]
    action_dim = w4.shape[1]

    n_tiles, tm_eff, bp = _choose_tiling(B, tm)
    state_p = state if bp == B else jnp.pad(state, ((0, bp - B), (0, 0)))
    grid = (n_tiles,)

    # Weights/biases stay VMEM-resident (constant index_map) while activation
    # tiles stream through double-buffered.
    resident = lambda shape: pl.BlockSpec(shape, lambda i: (0, 0))

    kernel = functools.partial(_actor_kernel, float(action_domain))

    flops = 2 * bp * (state_dim * _H1 + _H1 * _H2 + _H2 * h3p + h3p * action_dim)
    weight_bytes = sum(int(a.size) * a.dtype.itemsize
                       for a in (w1, b1, w2, b2, w3, b3, w4, b4))
    bytes_accessed = (4 * bp * state_dim
                      + jnp.dtype(out_dtype).itemsize * bp * action_dim
                      + weight_bytes)

    out = pl.pallas_call(
        kernel,
        out_shape=jax.ShapeDtypeStruct((bp, action_dim), out_dtype),
        grid=grid,
        in_specs=[
            pl.BlockSpec((tm_eff, state_dim), lambda i: (i, 0)),
            resident(w1.shape), resident(b1.shape),
            resident(w2.shape), resident(b2.shape),
            resident(w3.shape), resident(b3.shape),
            resident(w4.shape), resident(b4.shape),
        ],
        out_specs=pl.BlockSpec((tm_eff, action_dim), lambda i: (i, 0)),
        compiler_params=pltpu.CompilerParams(
            dimension_semantics=("parallel",),
            vmem_limit_bytes=vmem_limit_bytes),
        cost_estimate=pl.CostEstimate(
            flops=flops, transcendentals=bp * action_dim,
            bytes_accessed=bytes_accessed),
    )(state_p, w1, b1, w2, b2, w3, b3, w4, b4)

    return out if bp == B else out[:B]


def init_actor_params(key, state_dim, action_dim):
    """Deterministic init mirroring the PyTorch module's __init__.

    fc1..fc3 weights: fanin_init -> uniform(-1/sqrt(fanin), 1/sqrt(fanin))
    (PyTorch weight layout is (out,in); fanin defaults to size[0] = out).
    fc4 weight: .normal_(-0.003, 0.003) -> normal(mean=-0.003, std=0.003).
    Biases: PyTorch Linear default uniform(-1/sqrt(in), 1/sqrt(in)).
    Weights stored transposed here: (in_features, out_features).
    """
    dims = [state_dim, _H1, _H2, _H3, action_dim]
    keys = jax.random.split(key, 8)
    params = {}
    for i in range(4):
        d_in, d_out = dims[i], dims[i + 1]
        wk, bk = keys[2 * i], keys[2 * i + 1]
        if i < 3:
            v = 1.0 / jnp.sqrt(jnp.float32(d_out))  # fanin = size[0] = out_features
            w = jax.random.uniform(wk, (d_in, d_out), jnp.float32, -v, v)
        else:
            w = -0.003 + 0.003 * jax.random.normal(wk, (d_in, d_out), jnp.float32)
        bb = 1.0 / jnp.sqrt(jnp.float32(d_in))
        b = jax.random.uniform(bk, (1, d_out), jnp.float32, -bb, bb)
        params[f"w{i + 1}"] = w
        params[f"b{i + 1}"] = b
    return params


def actor_reference(state, params, action_domain):
    x = jnp.maximum(state @ params["w1"] + params["b1"], 0.0)
    x = jnp.maximum(x @ params["w2"] + params["b2"], 0.0)
    x = jnp.maximum(x @ params["w3"] + params["b3"], 0.0)
    return jnp.tanh(x @ params["w4"] + params["b4"]) * action_domain


if __name__ == "__main__":
    key = jax.random.PRNGKey(0)
    k_param, k_state = jax.random.split(key)

    batch, state_dim, action_dim = 4, 16, 8
    action_domain = 2.0

    params = init_actor_params(k_param, state_dim, action_dim)
    state = jax.random.normal(k_state, (batch, state_dim), jnp.float32)

    ref = actor_reference(state, params, action_domain)

    # One-time weight prep (done outside the hot path).
    prep_f32 = jax.block_until_ready(
        prepare_actor_params(params, compute_dtype=jnp.float32))
    prep_bf16 = jax.block_until_ready(
        prepare_actor_params(params, compute_dtype=jnp.bfloat16))

    # Exact path: f32 MXU operands, tight tolerance vs. the pure-JAX reference.
    out_f32 = jax.block_until_ready(
        actor_forward(state, prep_f32, action_domain))
    assert out_f32.shape == (batch, action_dim)
    assert jnp.allclose(out_f32, ref, atol=1e-5, rtol=1e-5)

    # Default perf path: bf16 MXU operands (f32 accumulate) -> looser tolerance.
    out_bf16 = jax.block_until_ready(
        actor_forward(state, prep_bf16, action_domain))
    assert out_bf16.shape == (batch, action_dim)
    assert jnp.allclose(out_bf16, ref, atol=5e-2, rtol=5e-2)

    # Optional bf16 output (halves writeback); checked at the same tolerance.
    out_bf16o = jax.block_until_ready(
        actor_forward(state, prep_bf16, action_domain, out_dtype=jnp.bfloat16))
    assert out_bf16o.dtype == jnp.bfloat16
    assert jnp.allclose(out_bf16o.astype(jnp.float32), ref, atol=5e-2, rtol=5e-2)

    print("KERNEL_OK")
</pallas_src>

<mosaic_0001>
module attributes {stable_mosaic.version = 11 : i64} {
  func.func @_actor_kernel(%arg0: i32, %arg1: memref<8x16xf32, #tpu.memory_space<vmem>>, %arg2: memref<16x256xf32, #tpu.memory_space<vmem>>, %arg3: memref<1x256xf32, #tpu.memory_space<vmem>>, %arg4: memref<256x128xf32, #tpu.memory_space<vmem>>, %arg5: memref<1x128xf32, #tpu.memory_space<vmem>>, %arg6: memref<128x128xf32, #tpu.memory_space<vmem>>, %arg7: memref<1x128xf32, #tpu.memory_space<vmem>>, %arg8: memref<128x8xf32, #tpu.memory_space<vmem>>, %arg9: memref<1x8xf32, #tpu.memory_space<vmem>>, %arg10: memref<8x8xf32, #tpu.memory_space<vmem>>) attributes {dimension_semantics = [#tpu.dimension_semantics<parallel>], iteration_bounds = array<i64: 1>, scalar_prefetch = 0 : i64, scratch_operands = 0 : i64, tpu.core_type = #tpu.core_type<tc>, window_params = [{transform_indices = @transform_0, window_bounds = array<i64: 8, 16>}, {pipeline_mode = #tpu.pipeline_mode<synchronous>, transform_indices = @transform_1, window_bounds = array<i64: 16, 256>}, {pipeline_mode = #tpu.pipeline_mode<synchronous>, transform_indices = @transform_2, window_bounds = array<i64: 1, 256>}, {pipeline_mode = #tpu.pipeline_mode<synchronous>, transform_indices = @transform_3, window_bounds = array<i64: 256, 128>}, {pipeline_mode = #tpu.pipeline_mode<synchronous>, transform_indices = @transform_4, window_bounds = array<i64: 1, 128>}, {pipeline_mode = #tpu.pipeline_mode<synchronous>, transform_indices = @transform_5, window_bounds = array<i64: 128, 128>}, {pipeline_mode = #tpu.pipeline_mode<synchronous>, transform_indices = @transform_6, window_bounds = array<i64: 1, 128>}, {pipeline_mode = #tpu.pipeline_mode<synchronous>, transform_indices = @transform_7, window_bounds = array<i64: 128, 8>}, {pipeline_mode = #tpu.pipeline_mode<synchronous>, transform_indices = @transform_8, window_bounds = array<i64: 1, 8>}, {transform_indices = @transform_9, window_bounds = array<i64: 8, 8>}]} {
    %c0 = arith.constant 0 : index
    %c0_0 = arith.constant 0 : index
    %0 = vector.load %arg1[%c0, %c0_0] : memref<8x16xf32, #tpu.memory_space<vmem>>, vector<8x16xf32>
    %c0_1 = arith.constant 0 : index
    %c0_2 = arith.constant 0 : index
    %1 = vector.load %arg2[%c0_1, %c0_2] : memref<16x256xf32, #tpu.memory_space<vmem>>, vector<16x256xf32>
    %cst = arith.constant dense<0.000000e+00> : vector<8x256xf32>
    %2 = tpu.matmul %0, %1, %cst {dimension_numbers = #tpu.dot_dimension_numbers<[1], [0], [0], [1], [0, 0, 1, 1], [], []>} : vector<8x16xf32>, vector<16x256xf32>, vector<8x256xf32> -> vector<8x256xf32>
    %c0_3 = arith.constant 0 : index
    %c0_4 = arith.constant 0 : index
    %3 = vector.load %arg3[%c0_3, %c0_4] : memref<1x256xf32, #tpu.memory_space<vmem>>, vector<1x256xf32>
    %4 = vector.broadcast %3 : vector<1x256xf32> to vector<8x256xf32>
    %5 = arith.addf %2, %4 : vector<8x256xf32>
    %cst_5 = arith.constant 0.000000e+00 : f32
    %6 = vector.broadcast %cst_5 : f32 to vector<8x256xf32>
    %7 = arith.maximumf %5, %6 : vector<8x256xf32>
    %c0_6 = arith.constant 0 : index
    %c0_7 = arith.constant 0 : index
    %8 = vector.load %arg4[%c0_6, %c0_7] : memref<256x128xf32, #tpu.memory_space<vmem>>, vector<256x128xf32>
    %cst_8 = arith.constant dense<0.000000e+00> : vector<8x128xf32>
    %9 = tpu.matmul %7, %8, %cst_8 {dimension_numbers = #tpu.dot_dimension_numbers<[1], [0], [0], [1], [0, 0, 1, 1], [], []>} : vector<8x256xf32>, vector<256x128xf32>, vector<8x128xf32> -> vector<8x128xf32>
    %c0_9 = arith.constant 0 : index
    %c0_10 = arith.constant 0 : index
    %10 = vector.load %arg5[%c0_9, %c0_10] : memref<1x128xf32, #tpu.memory_space<vmem>>, vector<1x128xf32>
    %11 = vector.broadcast %10 : vector<1x128xf32> to vector<8x128xf32>
    %12 = arith.addf %9, %11 : vector<8x128xf32>
    %cst_11 = arith.constant 0.000000e+00 : f32
    %13 = vector.broadcast %cst_11 : f32 to vector<8x128xf32>
    %14 = arith.maximumf %12, %13 : vector<8x128xf32>
    %c0_12 = arith.constant 0 : index
    %c0_13 = arith.constant 0 : index
    %15 = vector.load %arg6[%c0_12, %c0_13] : memref<128x128xf32, #tpu.memory_space<vmem>>, vector<128x128xf32>
    %cst_14 = arith.constant dense<0.000000e+00> : vector<8x128xf32>
    %16 = tpu.matmul %14, %15, %cst_14 {dimension_numbers = #tpu.dot_dimension_numbers<[1], [0], [0], [1], [0, 0, 1, 1], [], []>} : vector<8x128xf32>, vector<128x128xf32>, vector<8x128xf32> -> vector<8x128xf32>
    %c0_15 = arith.constant 0 : index
    %c0_16 = arith.constant 0 : index
    %17 = vector.load %arg7[%c0_15, %c0_16] : memref<1x128xf32, #tpu.memory_space<vmem>>, vector<1x128xf32>
    %18 = vector.broadcast %17 : vector<1x128xf32> to vector<8x128xf32>
    %19 = arith.addf %16, %18 : vector<8x128xf32>
    %cst_17 = arith.constant 0.000000e+00 : f32
    %20 = vector.broadcast %cst_17 : f32 to vector<8x128xf32>
    %21 = arith.maximumf %19, %20 : vector<8x128xf32>
    %c0_18 = arith.constant 0 : index
    %c0_19 = arith.constant 0 : index
    %22 = vector.load %arg8[%c0_18, %c0_19] : memref<128x8xf32, #tpu.memory_space<vmem>>, vector<128x8xf32>
    %cst_20 = arith.constant dense<0.000000e+00> : vector<8x8xf32>
    %23 = tpu.matmul %21, %22, %cst_20 {dimension_numbers = #tpu.dot_dimension_numbers<[1], [0], [0], [1], [0, 0, 1, 1], [], []>} : vector<8x128xf32>, vector<128x8xf32>, vector<8x8xf32> -> vector<8x8xf32>
    %c0_21 = arith.constant 0 : index
    %c0_22 = arith.constant 0 : index
    %24 = vector.load %arg9[%c0_21, %c0_22] : memref<1x8xf32, #tpu.memory_space<vmem>>, vector<1x8xf32>
    %25 = vector.broadcast %24 : vector<1x8xf32> to vector<8x8xf32>
    %26 = arith.addf %23, %25 : vector<8x8xf32>
    %27 = math.tanh %26 : vector<8x8xf32>
    %cst_23 = arith.constant 2.000000e+00 : f32
    %28 = vector.broadcast %cst_23 : f32 to vector<8x8xf32>
    %29 = arith.mulf %27, %28 : vector<8x8xf32>
    %c0_24 = arith.constant 0 : index
    %c0_25 = arith.constant 0 : index
    %30 = vector.load %arg10[%c0_24, %c0_25] : memref<8x8xf32, #tpu.memory_space<vmem>>, vector<8x8xf32>
    tpu.vector_store %arg10[%c0_24, %c0_25], %29 {strides = array<i32>} : memref<8x8xf32, #tpu.memory_space<vmem>>, vector<8x8xf32>,
    return
  }
  func.func @transform_0(%arg0: i32) -> (i32, i32) {
    %c0_i32 = arith.constant 0 : i32
    %c0_i32_0 = arith.constant 0 : i32
    return %arg0, %c0_i32 : i32, i32
  }
  func.func @transform_1(%arg0: i32) -> (i32, i32) {
    %c0_i32 = arith.constant 0 : i32
    %c0_i32_0 = arith.constant 0 : i32
    %c0_i32_1 = arith.constant 0 : i32
    return %c0_i32, %c0_i32_0 : i32, i32
  }
  func.func @transform_2(%arg0: i32) -> (i32, i32) {
    %c0_i32 = arith.constant 0 : i32
    %c0_i32_0 = arith.constant 0 : i32
    %c0_i32_1 = arith.constant 0 : i32
    return %c0_i32, %c0_i32_0 : i32, i32
  }
  func.func @transform_3(%arg0: i32) -> (i32, i32) {
    %c0_i32 = arith.constant 0 : i32
    %c0_i32_0 = arith.constant 0 : i32
    %c0_i32_1 = arith.constant 0 : i32
    return %c0_i32, %c0_i32_0 : i32, i32
  }
  func.func @transform_4(%arg0: i32) -> (i32, i32) {
    %c0_i32 = arith.constant 0 : i32
    %c0_i32_0 = arith.constant 0 : i32
    %c0_i32_1 = arith.constant 0 : i32
    return %c0_i32, %c0_i32_0 : i32, i32
  }
  func.func @transform_5(%arg0: i32) -> (i32, i32) {
    %c0_i32 = arith.constant 0 : i32
    %c0_i32_0 = arith.constant 0 : i32
    %c0_i32_1 = arith.constant 0 : i32
    return %c0_i32, %c0_i32_0 : i32, i32
  }
  func.func @transform_6(%arg0: i32) -> (i32, i32) {
    %c0_i32 = arith.constant 0 : i32
    %c0_i32_0 = arith.constant 0 : i32
    %c0_i32_1 = arith.constant 0 : i32
    return %c0_i32, %c0_i32_0 : i32, i32
  }
  func.func @transform_7(%arg0: i32) -> (i32, i32) {
    %c0_i32 = arith.constant 0 : i32
    %c0_i32_0 = arith.constant 0 : i32
    %c0_i32_1 = arith.constant 0 : i32
    return %c0_i32, %c0_i32_0 : i32, i32
  }
  func.func @transform_8(%arg0: i32) -> (i32, i32) {
    %c0_i32 = arith.constant 0 : i32
    %c0_i32_0 = arith.constant 0 : i32
    %c0_i32_1 = arith.constant 0 : i32
    return %c0_i32, %c0_i32_0 : i32, i32
  }
  func.func @transform_9(%arg0: i32) -> (i32, i32) {
    %c0_i32 = arith.constant 0 : i32
    %c0_i32_0 = arith.constant 0 : i32
    return %arg0, %c0_i32 : i32, i32
  }
}

</mosaic_0001>

<llo_original>
// kernel: tpu_custom_call.1
$region0: #{tpu_custom_call.1}
  #allocation0 [shape = 'u32[]', space=smem, size = 0x4, offset = 0x4, fixed_abs, tag = 'smem constant byte address 0x4 - core index']
  #allocation1 [shape = 'u32[144,128]{1,0:T(1,128)}', space=vmem, size = 0x12000, scoped, tag = 'internal scratch']
  %s0 = inlined_call_operand.vmem [shape: f32[8,16], index: 0, kind: input, shape index: {}]
  %s1 = inlined_call_operand.hbm [shape: f32[16,256], index: 1, kind: input, shape index: {}]
  %s2 = inlined_call_operand.vmem [shape: f32[1,256], index: 2, kind: input, shape index: {}]
  %s3 = inlined_call_operand.hbm [shape: f32[256,128], index: 3, kind: input, shape index: {}]
  %s4 = inlined_call_operand.vmem [shape: f32[1,128], index: 4, kind: input, shape index: {}]
  %s5 = inlined_call_operand.vmem [shape: f32[128,128], index: 5, kind: input, shape index: {}]
  %s6 = inlined_call_operand.vmem [shape: f32[1,128], index: 6, kind: input, shape index: {}]
  %s7 = inlined_call_operand.vmem [shape: f32[128,8], index: 7, kind: input, shape index: {}]
  %s8 = inlined_call_operand.vmem [shape: f32[1,8], index: 8, kind: input, shape index: {}]
  %s9 = inlined_call_operand.hbm [shape: f32[8,8], index: 9, kind: output, shape index: {}]
  %s10 = sld [smem:[#allocation0]]
  $region54: #{tpu_custom_call.1} parent=0
    _
  %s12 = ssub.s32 1, %s10
  %s13 = scalar_select 0, %s12, %s10
  $region1: #{tpu_custom_call.1} parent=0
    #allocation2 [shape = 'u8[16384]{0}', space=vmem, size = 0x4000, scoped, tag = 'input window, operand 1, single buffered']
    #allocation3 [shape = 's32[1]{0}', space=sflag, size = 0x4, scoped, tag = 'scoped memory for tpu_custom_call.1']
    #allocation4 [shape = 's32[1]{0}', space=sflag, size = 0x4, scoped, tag = 'scoped memory for tpu_custom_call.1']
    #allocation5 [shape = 'u8[131072]{0}', space=vmem, size = 0x20000, scoped, tag = 'input window, operand 3, single buffered']
    #allocation6 [shape = 's32[1]{0}', space=sflag, size = 0x4, scoped, tag = 'scoped memory for tpu_custom_call.1']
    #allocation7 [shape = 'u8[4096]{0}', space=vmem, size = 0x1000, scoped, tag = 'output window, operand 0, single buffered']
    %14 = vsyncpa [#allocation3], 0
    %15 = vsyncpa [#allocation6], 0
    %16 = vsyncpa [#allocation4], 0
    // Predicated region
    $region2: #{tpu_custom_call.1} parent=1 // pred_check
      _
    $region3: #{tpu_custom_call.1} parent=1 // pred_check_branch
      %18 = sbr.rel (0) target = $region5
    $region4: #{tpu_custom_call.1} parent=1 // pred_region
      _
    $region5: #{tpu_custom_call.1} parent=1 // pred_fallthru
      _
    // Predicated region
    $region6: #{tpu_custom_call.1} parent=1 // pred_check
      _
    $region7: #{tpu_custom_call.1} parent=1 // pred_check_branch
      %20 = sbr.rel (0) target = $region9
    $region8: #{tpu_custom_call.1} parent=1 // pred_region
      %s22 = ssub.s32 512, 512
      %23 = vsyncadd [#allocation3], %s22
      %s24 = sshll.u32 [#allocation2], 4
      %s25 = int_to_ptr.vmem [resolvable:$true] %s24
      %30 = dma.hbm_to_vmem [thread:$0]  %s1, 512, %s25, [#allocation3], 256, 256, 16
    $region9: #{tpu_custom_call.1} parent=1 // pred_fallthru
      _
    // Predicated region
    $region10: #{tpu_custom_call.1} parent=1 // pred_check
      _
    $region11: #{tpu_custom_call.1} parent=1 // pred_check_branch
      %32 = sbr.rel (0) target = $region13
    $region12: #{tpu_custom_call.1} parent=1 // pred_region
      _
    $region13: #{tpu_custom_call.1} parent=1 // pred_fallthru
      _
    // Predicated region
    $region14: #{tpu_custom_call.1} parent=1 // pred_check
      _
    $region15: #{tpu_custom_call.1} parent=1 // pred_check_branch
      %34 = sbr.rel (0) target = $region17
    $region16: #{tpu_custom_call.1} parent=1 // pred_region
      %s36 = ssub.s32 4096, 4096
      %37 = vsyncadd [#allocation6], %s36
      %s38 = sshll.u32 [#allocation5], 4
      %s39 = int_to_ptr.vmem [resolvable:$true] %s38
      %44 = dma.hbm_to_vmem [thread:$0]  %s3, 4096, %s39, [#allocation6], 128, 128, 8
    $region17: #{tpu_custom_call.1} parent=1 // pred_fallthru
      _
    // Predicated region
    $region18: #{tpu_custom_call.1} parent=1 // pred_check
      _
    $region19: #{tpu_custom_call.1} parent=1 // pred_check_branch
      %46 = sbr.rel (0) target = $region21
    $region20: #{tpu_custom_call.1} parent=1 // pred_region
      _
    $region21: #{tpu_custom_call.1} parent=1 // pred_fallthru
      _
    // Predicated region
    $region22: #{tpu_custom_call.1} parent=1 // pred_check
      _
    $region23: #{tpu_custom_call.1} parent=1 // pred_check_branch
      %48 = sbr.rel (0) target = $region25
    $region24: #{tpu_custom_call.1} parent=1 // pred_region
      _
    $region25: #{tpu_custom_call.1} parent=1 // pred_fallthru
      _
    // Predicated region
    $region26: #{tpu_custom_call.1} parent=1 // pred_check
      _
    $region27: #{tpu_custom_call.1} parent=1 // pred_check_branch
      %50 = sbr.rel (0) target = $region29
    $region28: #{tpu_custom_call.1} parent=1 // pred_region
      _
    $region29: #{tpu_custom_call.1} parent=1 // pred_fallthru
      _
    // Predicated region
    $region30: #{tpu_custom_call.1} parent=1 // pred_check
      _
    $region31: #{tpu_custom_call.1} parent=1 // pred_check_branch
      %52 = sbr.rel (0) target = $region33
    $region32: #{tpu_custom_call.1} parent=1 // pred_region
      _
    $region33: #{tpu_custom_call.1} parent=1 // pred_fallthru
      _
    // Predicated region
    $region34: #{tpu_custom_call.1} parent=1 // pred_check
      _
    $region35: #{tpu_custom_call.1} parent=1 // pred_check_branch
      %54 = sbr.rel (0) target = $region37
    $region36: #{tpu_custom_call.1} parent=1 // pred_region
      _
    $region37: #{tpu_custom_call.1} parent=1 // pred_fallthru
      _
    // Predicated region
    $region38: #{tpu_custom_call.1} parent=1 // pred_check
      _
    $region39: #{tpu_custom_call.1} parent=1 // pred_check_branch
      %56 = sbr.rel (0) target = $region41
    $region40: #{tpu_custom_call.1} parent=1 // pred_region
      %57 = dma.done [#allocation3], 512
    $region41: #{tpu_custom_call.1} parent=1 // pred_fallthru
      _
    // Predicated region
    $region42: #{tpu_custom_call.1} parent=1 // pred_check
      _
    $region43: #{tpu_custom_call.1} parent=1 // pred_check_branch
      %59 = sbr.rel (0) target = $region45
    $region44: #{tpu_custom_call.1} parent=1 // pred_region
      %60 = dma.done [#allocation6], 4096
    $region45: #{tpu_custom_call.1} parent=1 // pred_fallthru
      _
    %v61 = vld [vmem:[%s0] sm:$0xff]
    %v62 = vld [vmem:[#allocation2] sm:$0xff]
    %v63 = vld [vmem:[#allocation2 + $0x8] sm:$0xff]
    %v64 = vld [vmem:[#allocation2 + $0x10] sm:$0xff]
    %v65 = vld [vmem:[#allocation2 + $0x18] sm:$0xff]
    %v66 = vld [vmem:[%s2] sm:$0x3]
    %v68 = vlaneseq
    %v69 = vshrl.u32 %v68, 7
    %v70 = vsub.s32 0, %v69
    %v71 = vrot.slane %v66, %v70
    %v72 = vlaneseq
    %v73 = vshrl.u32 %v72, 7
    %v74 = vsub.s32 1, %v73
    %v75 = vrot.slane %v66, %v74
    %vm78 = vcmask 130048
    %v80 = vsel %vm78, %v61, 0
    %82 = vmatprep.subr.mxu0 0.0
    %83 = vmatpush1.msra.mxu0 0.0
    %84 = vmatprep.subr.mxu0 0.0
    %85 = vmatpush1.msra.mxu0 0.0
    %86 = vmatprep.subr.mxu0 0.0
    %87 = vmatpush1.msra.mxu0 0.0
    %88 = vmatprep.subr.mxu0 0.0
    %89 = vmatpush1.msra.mxu0 0.0
    %90 = vmatprep.subr.mxu0 0.0
    %91 = vmatpush1.msra.mxu0 0.0
    %92 = vmatprep.subr.mxu0 0.0
    %93 = vmatpush1.msra.mxu0 0.0
    %94 = vmatprep.subr.mxu0 0.0
    %95 = vmatpush1.msra.mxu0 0.0
    %96 = vmatprep.subr.mxu0 0.0
    %97 = vmatpush1.msra.mxu0 0.0
    %98 = vmatprep.subr.mxu0 0.0
    %99 = vmatpush1.msra.mxu0 0.0
    %100 = vmatprep.subr.mxu0 0.0
    %101 = vmatpush1.msra.mxu0 0.0
    %102 = vmatprep.subr.mxu0 0.0
    %103 = vmatpush1.msra.mxu0 0.0
    %104 = vmatprep.subr.mxu0 0.0
    %105 = vmatpush1.msra.mxu0 0.0
    %106 = vmatprep.subr.mxu0 0.0
    %107 = vmatpush1.msra.mxu0 0.0
    %108 = vmatprep.subr.mxu0 0.0
    %109 = vmatpush1.msra.mxu0 0.0
    %110 = vmatprep.subr.mxu0 %v65
    %111 = vmatpush1.msra.mxu0 %v64
    %112 = vmatprep.subr.mxu0 %v63
    %113 = vmatpush1.msra.mxu0 %v62
    %114 = vmatprep.subr.mxu0 0.0
    %115 = vmatpush2.msra.mxu0 0.0
    %116 = vmatprep.subr.mxu0 0.0
    %117 = vmatpush2.msra.mxu0 0.0
    %118 = vmatprep.subr.mxu0 0.0
    %119 = vmatpush2.msra.mxu0 0.0
    %120 = vmatprep.subr.mxu0 0.0
    %121 = vmatpush2.msra.mxu0 0.0
    %122 = vmatprep.subr.mxu0 0.0
    %123 = vmatpush2.msra.mxu0 0.0
    %124 = vmatprep.subr.mxu0 0.0
    %125 = vmatpush2.msra.mxu0 0.0
    %126 = vmatprep.subr.mxu0 0.0
    %127 = vmatpush2.msra.mxu0 0.0
    %128 = vmatprep.subr.mxu0 0.0
    %129 = vmatpush2.msra.mxu0 0.0
    %130 = vmatprep.subr.mxu0 0.0
    %131 = vmatpush2.msra.mxu0 0.0
    %132 = vmatprep.subr.mxu0 0.0
    %133 = vmatpush2.msra.mxu0 0.0
    %134 = vmatprep.subr.mxu0 0.0
    %135 = vmatpush2.msra.mxu0 0.0
    %136 = vmatprep.subr.mxu0 0.0
    %137 = vmatpush2.msra.mxu0 0.0
    %138 = vmatprep.subr.mxu0 0.0
    %139 = vmatpush2.msra.mxu0 0.0
    %140 = vmatprep.subr.mxu0 0.0
    %141 = vmatpush2.msra.mxu0 0.0
    %142 = vmatprep.subr.mxu0 0.0
    %143 = vmatpush2.msra.mxu0 0.0
    %144 = vmatprep.subr.mxu0 0.0
    %145 = vmatpush2.msra.mxu0 0.0
    %146 = vmatprep.mubr.f32.mxu0 0.0
    %147 = vmatmul.mubr.f32.gmra.mxu0 %v80
    %v148 = vpop.f32.mrf.mxu0
    %v149 = vadd.f32 %v71, %v148
    %v150 = vpop.f32.mrf.mxu0
    %v151 = vadd.f32 %v75, %v150
    %152 = vdwg.mxu0
    %v153 = vmax.f32 %v149, 0.0
    %v154 = vmax.f32 %v151, 0.0
    %v155 = vld [vmem:[#allocation5] sm:$0xff]
    %v156 = vld [vmem:[#allocation5 + $0x8] sm:$0xff]
    %v157 = vld [vmem:[#allocation5 + $0x10] sm:$0xff]
    %v158 = vld [vmem:[#allocation5 + $0x18] sm:$0xff]
    %v159 = vld [vmem:[#allocation5 + $0x20] sm:$0xff]
    %v160 = vld [vmem:[#allocation5 + $0x28] sm:$0xff]
    %v161 = vld [vmem:[#allocation5 + $0x30] sm:$0xff]
    %v162 = vld [vmem:[#allocation5 + $0x38] sm:$0xff]
    %v163 = vld [vmem:[#allocation5 + $0x40] sm:$0xff]
    %v164 = vld [vmem:[#allocation5 + $0x48] sm:$0xff]
    %v165 = vld [vmem:[#allocation5 + $0x50] sm:$0xff]
    %v166 = vld [vmem:[#allocation5 + $0x58] sm:$0xff]
    %v167 = vld [vmem:[#allocation5 + $0x60] sm:$0xff]
    %v168 = vld [vmem:[#allocation5 + $0x68] sm:$0xff]
    %v169 = vld [vmem:[#allocation5 + $0x70] sm:$0xff]
    %v170 = vld [vmem:[#allocation5 + $0x78] sm:$0xff]
    %v171 = vld [vmem:[#allocation5 + $0x80] sm:$0xff]
    %v172 = vld [vmem:[#allocation5 + $0x88] sm:$0xff]
    %v173 = vld [vmem:[#allocation5 + $0x90] sm:$0xff]
    %v174 = vld [vmem:[#allocation5 + $0x98] sm:$0xff]
    %v175 = vld [vmem:[#allocation5 + $0xa0] sm:$0xff]
    %v176 = vld [vmem:[#allocation5 + $0xa8] sm:$0xff]
    %v177 = vld [vmem:[#allocation5 + $0xb0] sm:$0xff]
    %v178 = vld [vmem:[#allocation5 + $0xb8] sm:$0xff]
    %v179 = vld [vmem:[#allocation5 + $0xc0] sm:$0xff]
    %v180 = vld [vmem:[#allocation5 + $0xc8] sm:$0xff]
    %v181 = vld [vmem:[#allocation5 + $0xd0] sm:$0xff]
    %v182 = vld [vmem:[#allocation5 + $0xd8] sm:$0xff]
    %v183 = vld [vmem:[#allocation5 + $0xe0] sm:$0xff]
    %v184 = vld [vmem:[#allocation5 + $0xe8] sm:$0xff]
    %v185 = vld [vmem:[#allocation5 + $0xf0] sm:$0xff]
    %v186 = vld [vmem:[#allocation5 + $0xf8] sm:$0xff]
    %v187 = vld [vmem:[%s4] sm:$0x1]
    %v189 = vlaneseq
    %v190 = vshrl.u32 %v189, 7
    %v191 = vsub.s32 0, %v190
    %v192 = vrot.slane %v187, %v191
    %194 = vmatprep.subr.mxu0 0.0
    %195 = vmatpush1.msra.mxu0 %v170
    %196 = vmatprep.subr.mxu0 0.0
    %197 = vmatpush1.msra.mxu0 %v169
    %198 = vmatprep.subr.mxu0 0.0
    %199 = vmatpush1.msra.mxu0 %v168
    %200 = vmatprep.subr.mxu0 0.0
    %201 = vmatpush1.msra.mxu0 %v167
    %202 = vmatprep.subr.mxu0 0.0
    %203 = vmatpush1.msra.mxu0 %v166
    %204 = vmatprep.subr.mxu0 0.0
    %205 = vmatpush1.msra.mxu0 %v165
    %206 = vmatprep.subr.mxu0 0.0
    %207 = vmatpush1.msra.mxu0 %v164
    %208 = vmatprep.subr.mxu0 0.0
    %209 = vmatpush1.msra.mxu0 %v163
    %210 = vmatprep.subr.mxu0 0.0
    %211 = vmatpush1.msra.mxu0 %v162
    %212 = vmatprep.subr.mxu0 0.0
    %213 = vmatpush1.msra.mxu0 %v161
    %214 = vmatprep.subr.mxu0 0.0
    %215 = vmatpush1.msra.mxu0 %v160
    %216 = vmatprep.subr.mxu0 0.0
    %217 = vmatpush1.msra.mxu0 %v159
    %218 = vmatprep.subr.mxu0 0.0
    %219 = vmatpush1.msra.mxu0 %v158
    %220 = vmatprep.subr.mxu0 0.0
    %221 = vmatpush1.msra.mxu0 %v157
    %222 = vmatprep.subr.mxu0 0.0
    %223 = vmatpush1.msra.mxu0 %v156
    %224 = vmatprep.subr.mxu0 0.0
    %225 = vmatpush1.msra.mxu0 %v155
    %226 = vmatprep.subr.mxu0 0.0
    %227 = vmatpush2.msra.mxu0 %v186
    %228 = vmatprep.subr.mxu0 0.0
    %229 = vmatpush2.msra.mxu0 %v185
    %230 = vmatprep.subr.mxu0 0.0
    %231 = vmatpush2.msra.mxu0 %v184
    %232 = vmatprep.subr.mxu0 0.0
    %233 = vmatpush2.msra.mxu0 %v183
    %234 = vmatprep.subr.mxu0 0.0
    %235 = vmatpush2.msra.mxu0 %v182
    %236 = vmatprep.subr.mxu0 0.0
    %237 = vmatpush2.msra.mxu0 %v181
    %238 = vmatprep.subr.mxu0 0.0
    %239 = vmatpush2.msra.mxu0 %v180
    %240 = vmatprep.subr.mxu0 0.0
    %241 = vmatpush2.msra.mxu0 %v179
    %242 = vmatprep.subr.mxu0 0.0
    %243 = vmatpush2.msra.mxu0 %v178
    %244 = vmatprep.subr.mxu0 0.0
    %245 = vmatpush2.msra.mxu0 %v177
    %246 = vmatprep.subr.mxu0 0.0
    %247 = vmatpush2.msra.mxu0 %v176
    %248 = vmatprep.subr.mxu0 0.0
    %249 = vmatpush2.msra.mxu0 %v175
    %250 = vmatprep.subr.mxu0 0.0
    %251 = vmatpush2.msra.mxu0 %v174
    %252 = vmatprep.subr.mxu0 0.0
    %253 = vmatpush2.msra.mxu0 %v173
    %254 = vmatprep.subr.mxu0 0.0
    %255 = vmatpush2.msra.mxu0 %v172
    %256 = vmatprep.subr.mxu0 0.0
    %257 = vmatpush2.msra.mxu0 %v171
    %258 = vmatprep.mubr.f32.mxu0 %v154
    %259 = vmatmul.mubr.f32.gmra.mxu0 %v153
    %v260 = vpop.f32.mrf.mxu0
    %v261 = vadd.f32 %v192, %v260
    %v262 = vpop.f32.mrf.mxu0
    %263 = vdwg.mxu0
    %v264 = vmax.f32 %v261, 0.0
    %v265 = vld [vmem:[%s5] sm:$0xff]
    %v266 = vld [vmem:[%s5 + $0x8] sm:$0xff]
    %v267 = vld [vmem:[%s5 + $0x10] sm:$0xff]
    %v268 = vld [vmem:[%s5 + $0x18] sm:$0xff]
    %v269 = vld [vmem:[%s5 + $0x20] sm:$0xff]
    %v270 = vld [vmem:[%s5 + $0x28] sm:$0xff]
    %v271 = vld [vmem:[%s5 + $0x30] sm:$0xff]
    %v272 = vld [vmem:[%s5 + $0x38] sm:$0xff]
    %v273 = vld [vmem:[%s5 + $0x40] sm:$0xff]
    %v274 = vld [vmem:[%s5 + $0x48] sm:$0xff]
    %v275 = vld [vmem:[%s5 + $0x50] sm:$0xff]
    %v276 = vld [vmem:[%s5 + $0x58] sm:$0xff]
    %v277 = vld [vmem:[%s5 + $0x60] sm:$0xff]
    %v278 = vld [vmem:[%s5 + $0x68] sm:$0xff]
    %v279 = vld [vmem:[%s5 + $0x70] sm:$0xff]
    %v280 = vld [vmem:[%s5 + $0x78] sm:$0xff]
    %v281 = vld [vmem:[%s6] sm:$0x1]
    %v283 = vlaneseq
    %v284 = vshrl.u32 %v283, 7
    %v285 = vsub.s32 0, %v284
    %v286 = vrot.slane %v281, %v285
    %288 = vmatprep.subr.mxu0 0.0
    %289 = vmatpush1.msra.mxu0 %v280
    %290 = vmatprep.subr.mxu0 0.0
    %291 = vmatpush1.msra.mxu0 %v279
    %292 = vmatprep.subr.mxu0 0.0
    %293 = vmatpush1.msra.mxu0 %v278
    %294 = vmatprep.subr.mxu0 0.0
    %295 = vmatpush1.msra.mxu0 %v277
    %296 = vmatprep.subr.mxu0 0.0
    %297 = vmatpush1.msra.mxu0 %v276
    %298 = vmatprep.subr.mxu0 0.0
    %299 = vmatpush1.msra.mxu0 %v275
    %300 = vmatprep.subr.mxu0 0.0
    %301 = vmatpush1.msra.mxu0 %v274
    %302 = vmatprep.subr.mxu0 0.0
    %303 = vmatpush1.msra.mxu0 %v273
    %304 = vmatprep.subr.mxu0 0.0
    %305 = vmatpush1.msra.mxu0 %v272
    %306 = vmatprep.subr.mxu0 0.0
    %307 = vmatpush1.msra.mxu0 %v271
    %308 = vmatprep.subr.mxu0 0.0
    %309 = vmatpush1.msra.mxu0 %v270
    %310 = vmatprep.subr.mxu0 0.0
    %311 = vmatpush1.msra.mxu0 %v269
    %312 = vmatprep.subr.mxu0 0.0
    %313 = vmatpush1.msra.mxu0 %v268
    %314 = vmatprep.subr.mxu0 0.0
    %315 = vmatpush1.msra.mxu0 %v267
    %316 = vmatprep.subr.mxu0 0.0
    %317 = vmatpush1.msra.mxu0 %v266
    %318 = vmatprep.subr.mxu0 0.0
    %319 = vmatpush1.msra.mxu0 %v265
    %320 = vmatprep.subr.mxu0 0.0
    %321 = vmatpush2.msra.mxu0 0.0
    %322 = vmatprep.subr.mxu0 0.0
    %323 = vmatpush2.msra.mxu0 0.0
    %324 = vmatprep.subr.mxu0 0.0
    %325 = vmatpush2.msra.mxu0 0.0
    %326 = vmatprep.subr.mxu0 0.0
    %327 = vmatpush2.msra.mxu0 0.0
    %328 = vmatprep.subr.mxu0 0.0
    %329 = vmatpush2.msra.mxu0 0.0
    %330 = vmatprep.subr.mxu0 0.0
    %331 = vmatpush2.msra.mxu0 0.0
    %332 = vmatprep.subr.mxu0 0.0
    %333 = vmatpush2.msra.mxu0 0.0
    %334 = vmatprep.subr.mxu0 0.0
    %335 = vmatpush2.msra.mxu0 0.0
    %336 = vmatprep.subr.mxu0 0.0
    %337 = vmatpush2.msra.mxu0 0.0
    %338 = vmatprep.subr.mxu0 0.0
    %339 = vmatpush2.msra.mxu0 0.0
    %340 = vmatprep.subr.mxu0 0.0
    %341 = vmatpush2.msra.mxu0 0.0
    %342 = vmatprep.subr.mxu0 0.0
    %343 = vmatpush2.msra.mxu0 0.0
    %344 = vmatprep.subr.mxu0 0.0
    %345 = vmatpush2.msra.mxu0 0.0
    %346 = vmatprep.subr.mxu0 0.0
    %347 = vmatpush2.msra.mxu0 0.0
    %348 = vmatprep.subr.mxu0 0.0
    %349 = vmatpush2.msra.mxu0 0.0
    %350 = vmatprep.subr.mxu0 0.0
    %351 = vmatpush2.msra.mxu0 0.0
    %352 = vmatprep.mubr.f32.mxu0 0.0
    %353 = vmatmul.mubr.f32.gmra.mxu0 %v264
    %v354 = vpop.f32.mrf.mxu0
    %v355 = vadd.f32 %v286, %v354
    %v356 = vpop.f32.mrf.mxu0
    %357 = vdwg.mxu0
    %v358 = vmax.f32 %v355, 0.0
    %v359 = vld [vmem:[%s7] sm:$0xff]
    %v360 = vld [vmem:[%s7 + $0x8] sm:$0xff]
    %v361 = vld [vmem:[%s7 + $0x10] sm:$0xff]
    %v362 = vld [vmem:[%s7 + $0x18] sm:$0xff]
    %v363 = vld [vmem:[%s7 + $0x20] sm:$0xff]
    %v364 = vld [vmem:[%s7 + $0x28] sm:$0xff]
    %v365 = vld [vmem:[%s7 + $0x30] sm:$0xff]
    %v366 = vld [vmem:[%s7 + $0x38] sm:$0xff]
    %v367 = vld [vmem:[%s7 + $0x40] sm:$0xff]
    %v368 = vld [vmem:[%s7 + $0x48] sm:$0xff]
    %v369 = vld [vmem:[%s7 + $0x50] sm:$0xff]
    %v370 = vld [vmem:[%s7 + $0x58] sm:$0xff]
    %v371 = vld [vmem:[%s7 + $0x60] sm:$0xff]
    %v372 = vld [vmem:[%s7 + $0x68] sm:$0xff]
    %v373 = vld [vmem:[%s7 + $0x70] sm:$0xff]
    %v374 = vld [vmem:[%s7 + $0x78] sm:$0xff]
    %v375 = vld [vmem:[%s8] sm:$0x1]
    %v377 = vlaneseq
    %v378 = vshrl.u32 %v377, 7
    %v379 = vsub.s32 0, %v378
    %v380 = vrot.slane %v375, %v379
    %382 = vmatprep.subr.mxu0 0.0
    %383 = vmatpush1.msra.mxu0 %v374
    %384 = vmatprep.subr.mxu0 0.0
    %385 = vmatpush1.msra.mxu0 %v373
    %386 = vmatprep.subr.mxu0 0.0
    %387 = vmatpush1.msra.mxu0 %v372
    %388 = vmatprep.subr.mxu0 0.0
    %389 = vmatpush1.msra.mxu0 %v371
    %390 = vmatprep.subr.mxu0 0.0
    %391 = vmatpush1.msra.mxu0 %v370
    %392 = vmatprep.subr.mxu0 0.0
    %393 = vmatpush1.msra.mxu0 %v369
    %394 = vmatprep.subr.mxu0 0.0
    %395 = vmatpush1.msra.mxu0 %v368
    %396 = vmatprep.subr.mxu0 0.0
    %397 = vmatpush1.msra.mxu0 %v367
    %398 = vmatprep.subr.mxu0 0.0
    %399 = vmatpush1.msra.mxu0 %v366
    %400 = vmatprep.subr.mxu0 0.0
    %401 = vmatpush1.msra.mxu0 %v365
    %402 = vmatprep.subr.mxu0 0.0
    %403 = vmatpush1.msra.mxu0 %v364
    %404 = vmatprep.subr.mxu0 0.0
    %405 = vmatpush1.msra.mxu0 %v363
    %406 = vmatprep.subr.mxu0 0.0
    %407 = vmatpush1.msra.mxu0 %v362
    %408 = vmatprep.subr.mxu0 0.0
    %409 = vmatpush1.msra.mxu0 %v361
    %410 = vmatprep.subr.mxu0 0.0
    %411 = vmatpush1.msra.mxu0 %v360
    %412 = vmatprep.subr.mxu0 0.0
    %413 = vmatpush1.msra.mxu0 %v359
    %414 = vmatprep.subr.mxu0 0.0
    %415 = vmatpush2.msra.mxu0 0.0
    %416 = vmatprep.subr.mxu0 0.0
    %417 = vmatpush2.msra.mxu0 0.0
    %418 = vmatprep.subr.mxu0 0.0
    %419 = vmatpush2.msra.mxu0 0.0
    %420 = vmatprep.subr.mxu0 0.0
    %421 = vmatpush2.msra.mxu0 0.0
    %422 = vmatprep.subr.mxu0 0.0
    %423 = vmatpush2.msra.mxu0 0.0
    %424 = vmatprep.subr.mxu0 0.0
    %425 = vmatpush2.msra.mxu0 0.0
    %426 = vmatprep.subr.mxu0 0.0
    %427 = vmatpush2.msra.mxu0 0.0
    %428 = vmatprep.subr.mxu0 0.0
    %429 = vmatpush2.msra.mxu0 0.0
    %430 = vmatprep.subr.mxu0 0.0
    %431 = vmatpush2.msra.mxu0 0.0
    %432 = vmatprep.subr.mxu0 0.0
    %433 = vmatpush2.msra.mxu0 0.0
    %434 = vmatprep.subr.mxu0 0.0
    %435 = vmatpush2.msra.mxu0 0.0
    %436 = vmatprep.subr.mxu0 0.0
    %437 = vmatpush2.msra.mxu0 0.0
    %438 = vmatprep.subr.mxu0 0.0
    %439 = vmatpush2.msra.mxu0 0.0
    %440 = vmatprep.subr.mxu0 0.0
    %441 = vmatpush2.msra.mxu0 0.0
    %442 = vmatprep.subr.mxu0 0.0
    %443 = vmatpush2.msra.mxu0 0.0
    %444 = vmatprep.subr.mxu0 0.0
    %445 = vmatpush2.msra.mxu0 0.0
    %446 = vmatprep.mubr.f32.mxu0 0.0
    %447 = vmatmul.mubr.f32.gmra.mxu0 %v358
    %v448 = vpop.f32.mrf.mxu0
    %v449 = vadd.f32 %v380, %v448
    %v450 = vpop.f32.mrf.mxu0
    %451 = vdwg.mxu0
    %v452 = vtanh.pop %v449
    %v453 = vmul.f32 %v452, 2.0
    %vm454 = vcmask 64512
    %455 = vst.msk [vmem:[#allocation7] sm:$0xff] %vm454, %v453
    // Predicated region
    $region46: #{tpu_custom_call.1} parent=1 // pred_check
      _
    $region47: #{tpu_custom_call.1} parent=1 // pred_check_branch
      %457 = sbr.rel (0) target = $region49
    $region48: #{tpu_custom_call.1} parent=1 // pred_region
      %s459 = ssub.s32 128, 128
      %460 = vsyncadd [#allocation4], %s459
      %s462 = sshll.u32 [#allocation7], 4
      %s463 = int_to_ptr.vmem [resolvable:$true] %s462
      %465 = dma.vmem_to_hbm [thread:$0]  %s463, 128, %s9, [#allocation4]
    $region49: #{tpu_custom_call.1} parent=1 // pred_fallthru
      _
    // Predicated region
    $region50: #{tpu_custom_call.1} parent=1 // pred_check
      _
    $region51: #{tpu_custom_call.1} parent=1 // pred_check_branch
      %467 = sbr.rel (0) target = $region53
    $region52: #{tpu_custom_call.1} parent=1 // pred_region
      %468 = dma.done [#allocation4], 128
    $region53: #{tpu_custom_call.1} parent=1 // pred_fallthru
      _
    %469 = vsyncpa [#allocation3], 1
    %470 = vsyncpa [#allocation6], 1
    %471 = vsyncpa [#allocation4], 1

</llo_original>
